<compile_context>
chip_gen: v7x
topology: tpu7x:2x2x1
jax: 0.10.0
libtpu: 0.0.40
codegen_flags: <defaults>
</compile_context>

<pallas_src>
import math
from functools import partial

import jax
import jax.numpy as jnp
from jax.experimental import pallas as pl
from jax.experimental.pallas import tpu as pltpu


# ----------------------------------------------------------------------------
# pure-JAX reference (mirrors the torch code literally); also the small-N path
# ----------------------------------------------------------------------------
def _ref(x, y=None, min_deg=0, max_deg=5):
    scales = jnp.asarray([2.0 ** i for i in range(min_deg, max_deg)], x.dtype)
    shape = x.shape[:-1] + (-1,)
    x_enc = (x[..., None, :] * scales[:, None]).reshape(shape)
    x_enc = jnp.concatenate([x_enc, x_enc + 0.5 * jnp.pi], axis=-1)
    if y is not None:
        y_enc = (y[..., None, :] * scales[:, None] ** 2).reshape(shape)
        y_enc = jnp.concatenate([y_enc, y_enc], axis=-1)
        x_ret = jnp.exp(-0.5 * y_enc) * jnp.sin(x_enc)
        y_ret = jnp.maximum(
            jnp.zeros_like(y_enc),
            0.5 * (1 - jnp.exp(-2 * y_enc) * jnp.cos(2 * x_enc)) - x_ret ** 2,
        )
        x_ret = jnp.concatenate([x_ret, x], axis=-1)
        return x_ret, y_ret
    return jnp.concatenate([jnp.sin(x_enc), x], axis=-1)


# ----------------------------------------------------------------------------
# kernels (transposed layout: feature rows on sublanes, N rows on lanes)
# ----------------------------------------------------------------------------
def _pe_kernel_x(x_ref, o_ref, *, scales):
    """x-only branch.  x_ref: (D, TN); o_ref: (2*L*D + D, TN)."""
    xf = x_ref[...].astype(jnp.float32)                      # (D, TN)
    # Dense (L*D, TN) block: row l*D + d = scales[l] * x[d].  Scales are Python
    # floats -> splat-constant multiplies, no captured array constant.
    xw = jnp.concatenate([xf * s for s in scales], axis=0)   # (L*D, TN)
    sn = jnp.sin(xw)                                          # 1 EUP pass
    cs = jnp.cos(xw)                                          # == sin(xw + pi/2)
    out = jnp.concatenate([sn, cs, xf], axis=0)               # (2*L*D + D, TN)
    o_ref[...] = out.astype(o_ref.dtype)                      # single store


def _pe_kernel_xy(x_ref, y_ref, xo_ref, yo_ref, *, scales):
    """x & y branch.  xo_ref: (2*L*D + D, TN); yo_ref: (2*L*D, TN)."""
    xf = x_ref[...].astype(jnp.float32)
    yf = y_ref[...].astype(jnp.float32)
    xw = jnp.concatenate([xf * s for s in scales], axis=0)         # (L*D, TN)
    yw = jnp.concatenate([yf * (s * s) for s in scales], axis=0)   # (L*D, TN)
    e = jnp.exp(-0.5 * yw)            # exp(-y_enc/2); 3 EUP passes total
    sn = jnp.sin(xw)
    cs = jnp.cos(xw)                  # == sin(xw + pi/2)
    e2 = e * e
    e4 = e2 * e2                      # exp(-2*y_enc)
    c2 = 1.0 - 2.0 * sn * sn          # cos(2*xw); 2nd half: cos(2x+pi) = -cos(2x)
    xr1 = e * sn
    xr2 = e * cs
    yr1 = jnp.maximum(0.0, 0.5 * (1.0 - e4 * c2) - xr1 * xr1)
    yr2 = jnp.maximum(0.0, 0.5 * (1.0 + e4 * c2) - xr2 * xr2)
    xo_ref[...] = jnp.concatenate([xr1, xr2, xf], axis=0).astype(xo_ref.dtype)
    yo_ref[...] = jnp.concatenate([yr1, yr2], axis=0).astype(yo_ref.dtype)


# ----------------------------------------------------------------------------
# wrapper
# ----------------------------------------------------------------------------
def _pad_rows(rows, dtype):
    """Sublane-tile padded row count (f32 -> x8, bf16 -> x16, int8/fp8 -> x32)."""
    itemsize = jnp.dtype(dtype).itemsize
    tile = 8 * max(1, 4 // itemsize)
    return -(-rows // tile) * tile


def _pick_lane_tile(n_rows, io_rows, dtype, temp_f32_rows):
    """Lane tile: multiple of 128, sized so double-buffered blocks (with their
    sublane padding) plus an allowance for in-kernel f32 temporaries stay
    roughly <= 8 MiB (safe under v5e's 16 MiB scoped-VMEM default; v6e/v7x
    have more headroom).  Also capped so the grid has >= 2 steps when there is
    enough work, keeping both v7x TensorCores fed via the "parallel" axis."""
    itemsize = jnp.dtype(dtype).itemsize
    per_lane = 2 * sum(_pad_rows(r, dtype) for r in io_rows) * itemsize
    per_lane += _pad_rows(temp_f32_rows, jnp.float32) * 4
    budget = 8 * 1024 * 1024
    tn = (budget // max(per_lane, 1)) // 128 * 128
    tn = max(128, min(8192, tn))
    if n_rows >= 256:                                 # >= 2 grid steps
        half = -(-pl.cdiv(n_rows, 2) // 128) * 128
        tn = min(tn, max(128, half))
    n_rounded = -(-n_rows // 128) * 128
    return min(tn, max(128, n_rounded))


def positional_encoding(x, y=None, min_deg=0, max_deg=5, *,
                        small_n_threshold=512, feature_major_output=False):
    scales = tuple(float(2 ** i) for i in range(min_deg, max_deg))
    L = len(scales)
    D = x.shape[-1]
    out_dim = 2 * L * D + D
    yenc_dim = 2 * L * D
    lead = x.shape[:-1]
    n = math.prod(lead) if lead else 1

    # Small-N fast path: pallas_call fixed cost + wrapper transposes dominate
    # for tiny inputs; let XLA fuse the whole expression instead.
    if n < small_n_threshold:
        out = _ref(x, y, min_deg, max_deg)
        if not feature_major_output:
            return out
        if y is None:
            return out.reshape(n, out_dim).T
        return out[0].reshape(n, out_dim).T, out[1].reshape(n, yenc_dim).T

    # Lane-dense layout: (N, D) -> (D, N) so the large N axis sits on lanes.
    xT = x.reshape(n, D).T

    if y is None:
        TN = _pick_lane_tile(n, (D, out_dim), x.dtype,
                             temp_f32_rows=4 * L * D + out_dim)
        grid = (pl.cdiv(n, TN),)
        out = pl.pallas_call(
            partial(_pe_kernel_x, scales=scales),
            out_shape=jax.ShapeDtypeStruct((out_dim, n), x.dtype),
            grid=grid,
            in_specs=[pl.BlockSpec((D, TN), lambda i: (0, i))],
            out_specs=pl.BlockSpec((out_dim, TN), lambda i: (0, i)),
            compiler_params=pltpu.CompilerParams(
                dimension_semantics=("parallel",)),
        )(xT)
        if feature_major_output:
            return out
        # TODO(synk): a following linear layer can consume the (out_dim, n)
        # layout directly (feature_major_output=True) and fold this transpose
        # into its weight, removing an extra HBM pass.
        return out.T.reshape(lead + (out_dim,))

    yT = y.reshape(n, D).T
    TN = _pick_lane_tile(n, (D, D, out_dim, yenc_dim), x.dtype,
                         temp_f32_rows=10 * L * D + out_dim + yenc_dim)
    grid = (pl.cdiv(n, TN),)
    xo, yo = pl.pallas_call(
        partial(_pe_kernel_xy, scales=scales),
        out_shape=(jax.ShapeDtypeStruct((out_dim, n), x.dtype),
                   jax.ShapeDtypeStruct((yenc_dim, n), x.dtype)),
        grid=grid,
        in_specs=[pl.BlockSpec((D, TN), lambda i: (0, i)),
                  pl.BlockSpec((D, TN), lambda i: (0, i))],
        out_specs=(pl.BlockSpec((out_dim, TN), lambda i: (0, i)),
                   pl.BlockSpec((yenc_dim, TN), lambda i: (0, i))),
        compiler_params=pltpu.CompilerParams(
            dimension_semantics=("parallel",)),
    )(xT, yT)
    if feature_major_output:
        return xo, yo
    return xo.T.reshape(lead + (out_dim,)), yo.T.reshape(lead + (yenc_dim,))


# ----------------------------------------------------------------------------
# self-test
# ----------------------------------------------------------------------------
if __name__ == "__main__":
    key = jax.random.PRNGKey(0)
    kx, ky, kx2, ky2 = jax.random.split(key, 4)

    # Small shape consistent with the module (batch=2, seq=8, coord dim=3):
    # exercises the small-N fast path.
    xs = jax.random.normal(kx, (2, 8, 3), dtype=jnp.float32)
    ys = jax.random.uniform(ky, (2, 8, 3), dtype=jnp.float32)
    o_s = jax.block_until_ready(positional_encoding(xs))
    assert o_s.shape == (2, 8, 33), o_s.shape
    assert jnp.allclose(o_s, _ref(xs), atol=1e-5, rtol=1e-5)
    xr_s, yr_s = positional_encoding(xs, ys)
    jax.block_until_ready((xr_s, yr_s))
    xr_ref_s, yr_ref_s = _ref(xs, ys)
    assert xr_s.shape == (2, 8, 33) and yr_s.shape == (2, 8, 30)
    assert jnp.allclose(xr_s, xr_ref_s, atol=1e-5, rtol=1e-5)
    assert jnp.allclose(yr_s, yr_ref_s, atol=1e-5, rtol=1e-5)

    # Slightly larger (still small) shape taking the Pallas kernel path, with a
    # ragged last lane block (n = 600 flattened rows, 2 grid steps).
    xl = jax.random.normal(kx2, (2, 300, 3), dtype=jnp.float32)
    yl = jax.random.uniform(ky2, (2, 300, 3), dtype=jnp.float32)

    # branch 1: x only
    o_l = jax.block_until_ready(positional_encoding(xl))
    assert o_l.shape == (2, 300, 33), o_l.shape
    ref_l = _ref(xl)
    assert jnp.allclose(o_l, ref_l, atol=1e-4, rtol=1e-4), \
        float(jnp.max(jnp.abs(o_l - ref_l)))

    # branch 2: x and y.  Tolerance slightly loosened: the kernel uses the
    # exact identities cos(2x) = 1 - 2 sin^2(x) and exp(-2y) = exp(-y/2)^4,
    # which can differ from the reference by a few ULP for large scaled args.
    xr_l, yr_l = positional_encoding(xl, yl)
    xr_l = jax.block_until_ready(xr_l)
    yr_l = jax.block_until_ready(yr_l)
    xr_ref_l, yr_ref_l = _ref(xl, yl)
    assert xr_l.shape == (2, 300, 33) and yr_l.shape == (2, 300, 30)
    assert jnp.allclose(xr_l, xr_ref_l, atol=1e-4, rtol=1e-4), \
        float(jnp.max(jnp.abs(xr_l - xr_ref_l)))
    assert jnp.allclose(yr_l, yr_ref_l, atol=1e-4, rtol=1e-4), \
        float(jnp.max(jnp.abs(yr_l - yr_ref_l)))

    print("KERNEL_OK")
</pallas_src>

<mosaic_0001>
module attributes {stable_mosaic.version = 11 : i64} {
  func.func @_pe_kernel_x(%arg0: i32, %arg1: memref<3x384xf32, #tpu.memory_space<vmem>>, %arg2: memref<33x384xf32, #tpu.memory_space<vmem>>) attributes {dimension_semantics = [#tpu.dimension_semantics<parallel>], iteration_bounds = array<i64: 2>, scalar_prefetch = 0 : i64, scratch_operands = 0 : i64, tpu.core_type = #tpu.core_type<tc>, window_params = [{transform_indices = @transform_0, window_bounds = array<i64: 3, 384>}, {transform_indices = @transform_1, window_bounds = array<i64: 33, 384>}]} {
    %c0 = arith.constant 0 : index
    %c0_0 = arith.constant 0 : index
    %0 = vector.load %arg1[%c0, %c0_0] : memref<3x384xf32, #tpu.memory_space<vmem>>, vector<3x384xf32>
    %cst = arith.constant 1.000000e+00 : f32
    %1 = vector.broadcast %cst : f32 to vector<3x384xf32>
    %2 = arith.mulf %0, %1 : vector<3x384xf32>
    %cst_1 = arith.constant 2.000000e+00 : f32
    %3 = vector.broadcast %cst_1 : f32 to vector<3x384xf32>
    %4 = arith.mulf %0, %3 : vector<3x384xf32>
    %cst_2 = arith.constant 4.000000e+00 : f32
    %5 = vector.broadcast %cst_2 : f32 to vector<3x384xf32>
    %6 = arith.mulf %0, %5 : vector<3x384xf32>
    %cst_3 = arith.constant 8.000000e+00 : f32
    %7 = vector.broadcast %cst_3 : f32 to vector<3x384xf32>
    %8 = arith.mulf %0, %7 : vector<3x384xf32>
    %cst_4 = arith.constant 1.600000e+01 : f32
    %9 = vector.broadcast %cst_4 : f32 to vector<3x384xf32>
    %10 = arith.mulf %0, %9 : vector<3x384xf32>
    %11 = tpu.concatenate %2, %4, %6, %8, %10 in 0 : vector<3x384xf32>, vector<3x384xf32>, vector<3x384xf32>, vector<3x384xf32>, vector<3x384xf32> -> vector<15x384xf32>
    %12 = math.sin %11 : vector<15x384xf32>
    %13 = math.cos %11 : vector<15x384xf32>
    %14 = tpu.concatenate %12, %13, %0 in 0 : vector<15x384xf32>, vector<15x384xf32>, vector<3x384xf32> -> vector<33x384xf32>
    %c0_5 = arith.constant 0 : index
    %c0_6 = arith.constant 0 : index
    %15 = vector.load %arg2[%c0_5, %c0_6] : memref<33x384xf32, #tpu.memory_space<vmem>>, vector<33x384xf32>
    tpu.vector_store %arg2[%c0_5, %c0_6], %14 {strides = array<i32>} : memref<33x384xf32, #tpu.memory_space<vmem>>, vector<33x384xf32>,
    return
  }
  func.func @transform_0(%arg0: i32) -> (i32, i32) {
    %c0_i32 = arith.constant 0 : i32
    %c0_i32_0 = arith.constant 0 : i32
    return %c0_i32, %arg0 : i32, i32
  }
  func.func @transform_1(%arg0: i32) -> (i32, i32) {
    %c0_i32 = arith.constant 0 : i32
    %c0_i32_0 = arith.constant 0 : i32
    return %c0_i32, %arg0 : i32, i32
  }
}

</mosaic_0001>

<llo_original>
// kernel: tpu_custom_call.1
$region0: #{tpu_custom_call.1}
  #allocation0 [shape = 'u32[]', space=smem, size = 0x4, offset = 0x4, fixed_abs, tag = 'smem constant byte address 0x4 - core index']
  #allocation1 [shape = 'u32[144,128]{1,0:T(1,128)}', space=vmem, size = 0x12000, scoped, tag = 'internal scratch']
  %s0 = inlined_call_operand.hbm [shape: f32[3,600], index: 0, kind: input, shape index: {}]
  %s1 = inlined_call_operand.hbm [shape: f32[33,600], index: 1, kind: output, shape index: {}]
  %s2 = sld [smem:[#allocation0]]
  $region41: #{tpu_custom_call.1} parent=0
    _
  %s4 = ssub.s32 1, %s2
  %s5 = scalar_select 0, %s4, %s2
  $region1: #{tpu_custom_call.1} parent=0
    #allocation2 [shape = 'u8[12288]{0}', space=vmem, size = 0x3000, scoped, tag = 'input window, operand 0']
    #allocation3 [shape = 's32[2]{0}', space=sflag, size = 0x8, scoped, tag = 'scoped memory for tpu_custom_call.1']
    #allocation4 [shape = 's32[2]{0}', space=sflag, size = 0x8, scoped, tag = 'scoped memory for tpu_custom_call.1']
    #allocation5 [shape = 'u8[122880]{0}', space=vmem, size = 0x1e000, scoped, tag = 'output window, operand 0']
    %6 = vsyncpa [#allocation3], 0
    %s7 = scalar_lea.sflag [#allocation3], 1
    %8 = vsyncpa %s7, 0
    %9 = vsyncpa [#allocation4], 0
    %s10 = scalar_lea.sflag [#allocation4], 1
    %11 = vsyncpa %s10, 0
    loop: start=0, step=1, limit=4
    $region2: #{tpu_custom_call.1} parent=1 // loop_pre_header
      _
    $region3: #{tpu_custom_call.1} parent=1 // loop_header
      %s13 = sphi 0, %s17
      %p14 = scmp.ge.s32.totalorder %s13, 4
      %s23 = sphi 0, %s25
      %s26 = sphi 0, %s23
      %s27 = sphi 0, %s26
      %s43 = sphi 0, %s27
      %s49 = sphi 0, %s51
      %s52 = sphi 0, %s49
      %s53 = sphi 0, %s52
      %s69 = sphi 0, %s53
    $region4: #{tpu_custom_call.1} parent=1 // loop_header_branch
      %16 = sbr.rel (%p14) target = $region8
    $region5: #{tpu_custom_call.1} parent=1 // loop_body
      %s18 = ssub.s32 %s13, 1
      %s19 = ssub.s32 %s13, 2
      %s20 = sadd.s32 %s13, 1
      %s21 = ssub.s32 %s13, %s20
      %p22 = scmp.eq.s32.totalorder %s21, 0
      %s24 = sadd.s32 %s23, 1
      %s25 = scalar_select %p22, %s23, %s24
      %p28 = pneg %p22
      %p29 = scmp.eq.s32.totalorder %s13, 1
      %p30 = por %p28, %p29
      %p31 = scmp.ne.s32.totalorder %s23, %s26
      %p32 = scmp.eq.s32.totalorder %s13, 0
      %p33 = por %p31, %p32
      %p34 = scmp.ne.s32.totalorder %s23, %s26
      %p35 = scmp.eq.s32.totalorder %s18, 1
      %p36 = por %p34, %p35
      %p37 = scmp.ne.s32.totalorder %s26, %s27
      %p38 = scmp.eq.s32.totalorder %s18, 0
      %p39 = por %p37, %p38
      %p40 = scmp.ne.s32.totalorder %s26, %s27
      %p41 = scmp.eq.s32.totalorder %s19, 1
      %p42 = por %p40, %p41
      %p44 = scmp.ne.s32.totalorder %s27, %s43
      %p45 = scmp.eq.s32.totalorder %s19, 0
      %p46 = por %p44, %p45
      %s47 = ssub.s32 %s13, %s20
      %p48 = scmp.eq.s32.totalorder %s47, 0
      %s50 = sadd.s32 %s49, 1
      %s51 = scalar_select %p48, %s49, %s50
      %p54 = pneg %p48
      %p55 = scmp.eq.s32.totalorder %s13, 1
      %p56 = por %p54, %p55
      %p57 = scmp.ne.s32.totalorder %s49, %s52
      %p58 = scmp.eq.s32.totalorder %s13, 0
      %p59 = por %p57, %p58
      %p60 = scmp.ne.s32.totalorder %s49, %s52
      %p61 = scmp.eq.s32.totalorder %s18, 1
      %p62 = por %p60, %p61
      %p63 = scmp.ne.s32.totalorder %s52, %s53
      %p64 = scmp.eq.s32.totalorder %s18, 0
      %p65 = por %p63, %p64
      %p66 = scmp.ne.s32.totalorder %s52, %s53
      %p67 = scmp.eq.s32.totalorder %s19, 1
      %p68 = por %p66, %p67
      %p70 = scmp.ne.s32.totalorder %s53, %s69
      %p71 = scmp.eq.s32.totalorder %s19, 0
      %p72 = por %p70, %p71
      %p73 = scmp.le.s32.totalorder 1, %s13
      %p74 = scmp.lt.s32.totalorder %s13, 3
      %p75 = pnand %p73, %p74
      %p76 = pneg %p75
      // Predicated region
      $region9: #{tpu_custom_call.1} parent=5 // pred_check
        _
      $region10: #{tpu_custom_call.1} parent=5 // pred_check_branch
        %78 = sbr.rel (%p75) target = $region12
      $region11: #{tpu_custom_call.1} parent=5 // pred_region
        %s79 = ssub.s32 %s13, 1
      $region12: #{tpu_custom_call.1} parent=5 // pred_fallthru
        _
      %p80 = scmp.lt.s32.totalorder %s13, 2
      // Predicated region
      $region13: #{tpu_custom_call.1} parent=5 // pred_check
        %p81 = pneg %p80
      $region14: #{tpu_custom_call.1} parent=5 // pred_check_branch
        %83 = sbr.rel (%p81) target = $region16
      $region15: #{tpu_custom_call.1} parent=5 // pred_region
        // Predicated region
        $region17: #{tpu_custom_call.1} parent=15 // pred_check
          %p84 = pneg %p33
        $region18: #{tpu_custom_call.1} parent=15 // pred_check_branch
          %86 = sbr.rel (%p84) target = $region20
        $region19: #{tpu_custom_call.1} parent=15 // pred_region
          %s87 = sand.u32 %s23, 1
          %s88 = scalar_lea.sflag [#allocation3], %s87
          %s89 = sand.u32 %s23, 1
          %s90 = smul.addr %s89, 12
          %s91 = scalar_lea.vmem [#allocation2], %s90
          %s92 = smul.u32 3, %s13
          %s93 = ssub.s32 5, %s92
          %p94 = scmp.lt.s32.totalorder %s93, 3
          %s95 = scalar_select %p94, %s93, 3
          %s96 = smul.u32 64, %s95
          %s98 = ssub.s32 192, %s96
          %99 = vsyncadd %s88, %s98
          %p100 = scmp.ne.s32.totalorder 0, %s96
          %s101 = smul.addr %s92, 64
          %s102 = scalar_lea.hbm %s0, %s101
          %s103 = smul.u32 %s95, 4
          %s104 = sshll.u32 %s103, 4
          %s105 = sshll.u32 %s91, 4
          %s106 = int_to_ptr.vmem [resolvable:$true] %s105
          %108 = dma.hbm_to_vmem [thread:$0]  (%p100), %s102, %s104, %s106, %s88
        $region20: #{tpu_custom_call.1} parent=15 // pred_fallthru
          _
      $region16: #{tpu_custom_call.1} parent=5 // pred_fallthru
        _
      %p109 = scmp.le.s32.totalorder 1, %s13
      %p110 = scmp.lt.s32.totalorder %s13, 3
      %p111 = pnand %p109, %p110
      %p112 = pneg %p111
      // Predicated region
      $region21: #{tpu_custom_call.1} parent=5 // pred_check
        _
      $region22: #{tpu_custom_call.1} parent=5 // pred_check_branch
        %114 = sbr.rel (%p111) target = $region24
      $region23: #{tpu_custom_call.1} parent=5 // pred_region
        %s115 = ssub.s32 %s13, 1
        %s116 = sand.u32 %s26, 1
        %s117 = scalar_lea.sflag [#allocation3], %s116
        %s118 = sand.u32 %s26, 1
        %s119 = smul.addr %s118, 12
        %s120 = scalar_lea.vmem [#allocation2], %s119
        // Predicated region
        $region25: #{tpu_custom_call.1} parent=23 // pred_check
          %p121 = pneg %p39
        $region26: #{tpu_custom_call.1} parent=23 // pred_check_branch
          %123 = sbr.rel (%p121) target = $region28
        $region27: #{tpu_custom_call.1} parent=23 // pred_region
          %124 = dma.done %s117, 192
        $region28: #{tpu_custom_call.1} parent=23 // pred_fallthru
          _
        %s125 = sand.u32 %s26, 1
        %s126 = scalar_lea.sflag [#allocation3], %s125
        %s127 = sand.u32 %s26, 1
        %s128 = smul.addr %s127, 12
        %s129 = scalar_lea.vmem [#allocation2], %s128
        %p130 = pneg %p39
        %p131 = pneg %p36
        %p132 = pneg %p65
        %p133 = pneg %p62
        %s134 = sand.u32 %s52, 1
        %s135 = scalar_lea.sflag [#allocation4], %s134
        %s136 = sand.u32 %s52, 1
        %s137 = smul.addr %s136, 120
        %s138 = scalar_lea.vmem [#allocation5], %s137
        %s139 = smul.u32 3, %s18
        %s140 = ssub.s32 5, %s139
        %p141 = scmp.lt.s32.totalorder %s140, 3
        %s142 = scalar_select %p141, %s140, 3
        %s143 = smul.u32 64, %s142
        %s144 = smul.u32 3, %s18
        %s145 = ssub.s32 5, %s144
        %p146 = scmp.lt.s32.totalorder %s145, 3
        %s147 = scalar_select %p146, %s145, 3
        %s148 = smul.u32 640, %s147
        %v149 = vld [vmem:[%s120] sm:$0x77]
        %v150 = vld [vmem:[%s120 + $0x8] sm:$0x7]
        %v151 = vmul.f32 %v149, 2.0
        %v152 = vmul.f32 %v150, 2.0
        %v153 = vmul.f32 %v149, 4.0
        %v154 = vmul.f32 %v150, 4.0
        %v155 = vmul.f32 %v149, 8.0
        %v156 = vmul.f32 %v150, 8.0
        %v157 = vmul.f32 %v149, 16.0
        %v158 = vmul.f32 %v150, 16.0
        %v161 = vcombine.high %v149, %v149
        %v165 = vcombine.high %v151, %v151
        %v166 = vrot.slane %v151, 5
        %v167 = vrot.slane %v165, 5
        %v168 = vrot.slane %v152, 5
        %v174 = vcombine.high %v153, %v153
        %v175 = vrot.slane %v153, 2
        %v176 = vrot.slane %v174, 2
        %v177 = vrot.slane %v154, 2
        %v183 = vcombine.high %v155, %v155
        %v184 = vrot.slane %v155, 7
        %v185 = vrot.slane %v183, 7
        %v186 = vrot.slane %v156, 7
        %v192 = vcombine.low %v157, %v157
        %v193 = vcombine.low %v158, %v158
        %vm196 = vcmask 1042432
        %v197 = vsel %vm196, %v149, %v166
        %v198 = vsel %vm196, %v161, %v167
        %v199 = vsel %vm196, %v150, %v168
        %vm200 = vcmask 1045504
        %v201 = vsel %vm200, %v197, %v175
        %v202 = vsel %vm200, %v198, %v176
        %v203 = vsel %vm200, %v199, %v177
        %vm204 = vcmask 1040384
        %v205 = vsel %vm204, %v175, %v184
        %v206 = vsel %vm204, %v176, %v185
        %v207 = vsel %vm204, %v177, %v186
        %vm208 = vcmask 1043456
        %v209 = vsel %vm208, %v205, %v192
        %v210 = vsel %vm208, %v206, %v157
        %v211 = vsel %vm208, %v207, %v193
        %v212 = vand.u32 2147483647, %v201
        %vm213 = vcmp.le.f32.partialorder %v212, 0.7853982
        %vm214 = vcmp.lt.s32.totalorder %v201, 0
        %v215 = vand.u32 %v201, 2139095040
        %v216 = vshrl.u32 %v215, 23
        %v217 = vsub.s32 %v216, 127
        %v218 = vand.u32 2147483647, %v201
        %v219 = vand.u32 %v218, 8388607
        %v220 = vor.u32 %v219, 8388608
        %v221 = vsub.s32 0, %v220
        %v222 = vadd.s32 %v217, 1
        %vm223 = vcmp.gt.s32.totalorder %v222, 0
        %v224 = vsel %vm223, %v222, 0
        %v225 = vshrl.u32 %v224, 5
        %v226 = vand.u32 %v224, 31
        %v227 = vsub.s32 32, %v226
        %v228 = vshrl.u32 683565275, %v227
        %v229 = vshll.u32 683565275, %v226
        %v230 = vshrl.u32 2475754826, %v227
        %v231 = vor.u32 %v229, %v230
        %v232 = vshll.u32 2475754826, %v226
        %v233 = vshrl.u32 2131351028, %v227
        %v234 = vor.u32 %v232, %v233
        %v235 = vshll.u32 2131351028, %v226
        %v236 = vshrl.u32 2102212464, %v227
        %v237 = vor.u32 %v235, %v236
        %v238 = vshll.u32 2102212464, %v226
        %v239 = vshrl.u32 920167782, %v227
        %v240 = vor.u32 %v238, %v239
        %v241 = vshll.u32 920167782, %v226
        %v242 = vshrl.u32 1326507024, %v227
        %v243 = vor.u32 %v241, %v242
        %vm244 = vcmp.lt.s32.totalorder %v225, 1
        %vm245 = vcmp.lt.s32.totalorder %v225, 2
        %vm246 = vcmp.lt.s32.totalorder %v225, 3
        %vm247 = vcmp.lt.s32.totalorder %v225, 4
        %v248 = vsel %vm244, %v228, %v231
        %v249 = vsel %vm247, %v237, 2102212464
        %v250 = vsel %vm246, %v234, %v249
        %v251 = vsel %vm245, %v248, %v250
        %v252 = vsel %vm244, %v231, %v234
        %v253 = vsel %vm247, %v240, 920167782
        %v254 = vsel %vm246, %v237, %v253
        %v255 = vsel %vm245, %v252, %v254
        %v256 = vsel %vm244, %v234, %v237
        %v257 = vsel %vm247, %v243, 1326507024
        %v258 = vsel %vm246, %v240, %v257
        %v259 = vsel %vm245, %v256, %v258
        %v260 = vshll.u32 %v220, 8
        %v261 = vmul.u32.u64.compose %v260, %v259
        %v262 = vextract.low.u32 %v261
        %v263 = vextract.high.u32 %v261
        %v264 = vmul.u32.u64.compose %v260, %v255
        %v265 = vextract.low.u32 %v264
        %v266 = vextract.high.u32 %v264
        %v267 = vmul.u32 %v260, %v251
        %v268 = vadd.s32 %v263, %v265
        %vm269 = vc.u32 %v263, %v265
        %v270 = vadd.s32 %v266, 1
        %v271 = vsel %vm269, %v270, %v266
        %v272 = vadd.s32 %v267, %v271
        %v273 = vadd.s32 %v272, 536870912
        %v274 = vshrl.u32 %v273, 30
        %v275 = vshll.u32 %v274, 30
        %v276 = vsub.s32 %v272, %v275
        %vm277 = vcmp.lt.s32.totalorder %v276, 0
        %v278 = vsub.s32 0, %v276
        %v279 = vsel %vm277, %v278, %v276
        %v280 = vclz %v279
        %v281 = vsub.s32 %v280, 2
        %vm282 = vcmp.gt.s32.totalorder 0, %v281
        %v283 = vsel %vm282, 0, %v281
        %v284 = vsub.s32 32, %v283
        %v285 = vshll.u32 %v276, %v283
        %v286 = vshrl.u32 %v268, %v284
        %v287 = vor.u32 %v285, %v286
        %v288 = vsub.s32 4294967266, %v283
        %v289 = vadd.s32 %v288, 127
        %v290 = vshll.u32 %v289, 23
        %v291 = vor.u32 4788187, %v290
        %v292 = vand.u32 2147483647, %v291
        %v294 = vcvt.s32.f32 %v287
        %v295 = vmul.f32 %v294, %v292
        %v296 = vxor.u32 %v295, 2147483648
        %v297 = vsel %vm214, %v296, %v295
        %v298 = vsub.s32 4, %v274
        %v299 = vsel %vm214, %v298, %v274
        %v300 = vsel %vm213, %v201, %v297
        %v301 = vsel %vm213, 0, %v299
        %v302 = vcosq.f32.pop %v300
        %v303 = vsinq.f32.pop %v300
        %vm304 = vweird.f32 %v201
        %v305 = vadd.s32 %v301, 3
        %v306 = vand.u32 %v305, 3
        %vm307 = vcmp.lt.s32.totalorder %v306, 2
        %vm308 = vcmp.eq.s32.totalorder %v306, 0
        %v309 = vxor.u32 %v303, 2147483648
        %v310 = vsel %vm308, %v302, %v309
        %vm311 = vcmp.eq.s32.totalorder %v306, 2
        %v312 = vxor.u32 %v302, 2147483648
        %v313 = vsel %vm311, %v312, %v303
        %v314 = vsel %vm307, %v310, %v313
        %v315 = vsel %vm304, nan, %v314
        %v316 = vand.u32 2147483647, %v202
        %vm317 = vcmp.le.f32.partialorder %v316, 0.7853982
        %vm318 = vcmp.lt.s32.totalorder %v202, 0
        %v319 = vand.u32 %v202, 2139095040
        %v320 = vshrl.u32 %v319, 23
        %v321 = vsub.s32 %v320, 127
        %v322 = vand.u32 2147483647, %v202
        %v323 = vand.u32 %v322, 8388607
        %v324 = vor.u32 %v323, 8388608
        %v325 = vsub.s32 0, %v324
        %v326 = vadd.s32 %v321, 1
        %vm327 = vcmp.gt.s32.totalorder %v326, 0
        %v328 = vsel %vm327, %v326, 0
        %v329 = vshrl.u32 %v328, 5
        %v330 = vand.u32 %v328, 31
        %v331 = vsub.s32 32, %v330
        %v332 = vshrl.u32 683565275, %v331
        %v333 = vshll.u32 683565275, %v330
        %v334 = vshrl.u32 2475754826, %v331
        %v335 = vor.u32 %v333, %v334
        %v336 = vshll.u32 2475754826, %v330
        %v337 = vshrl.u32 2131351028, %v331
        %v338 = vor.u32 %v336, %v337
        %v339 = vshll.u32 2131351028, %v330
        %v340 = vshrl.u32 2102212464, %v331
        %v341 = vor.u32 %v339, %v340
        %v342 = vshll.u32 2102212464, %v330
        %v343 = vshrl.u32 920167782, %v331
        %v344 = vor.u32 %v342, %v343
        %v345 = vshll.u32 920167782, %v330
        %v346 = vshrl.u32 1326507024, %v331
        %v347 = vor.u32 %v345, %v346
        %vm348 = vcmp.lt.s32.totalorder %v329, 1
        %vm349 = vcmp.lt.s32.totalorder %v329, 2
        %vm350 = vcmp.lt.s32.totalorder %v329, 3
        %vm351 = vcmp.lt.s32.totalorder %v329, 4
        %v352 = vsel %vm348, %v332, %v335
        %v353 = vsel %vm351, %v341, 2102212464
        %v354 = vsel %vm350, %v338, %v353
        %v355 = vsel %vm349, %v352, %v354
        %v356 = vsel %vm348, %v335, %v338
        %v357 = vsel %vm351, %v344, 920167782
        %v358 = vsel %vm350, %v341, %v357
        %v359 = vsel %vm349, %v356, %v358
        %v360 = vsel %vm348, %v338, %v341
        %v361 = vsel %vm351, %v347, 1326507024
        %v362 = vsel %vm350, %v344, %v361
        %v363 = vsel %vm349, %v360, %v362
        %v364 = vshll.u32 %v324, 8
        %v365 = vmul.u32.u64.compose %v364, %v363
        %v366 = vextract.low.u32 %v365
        %v367 = vextract.high.u32 %v365
        %v368 = vmul.u32.u64.compose %v364, %v359
        %v369 = vextract.low.u32 %v368
        %v370 = vextract.high.u32 %v368
        %v371 = vmul.u32 %v364, %v355
        %v372 = vadd.s32 %v367, %v369
        %vm373 = vc.u32 %v367, %v369
        %v374 = vadd.s32 %v370, 1
        %v375 = vsel %vm373, %v374, %v370
        %v376 = vadd.s32 %v371, %v375
        %v377 = vadd.s32 %v376, 536870912
        %v378 = vshrl.u32 %v377, 30
        %v379 = vshll.u32 %v378, 30
        %v380 = vsub.s32 %v376, %v379
        %vm381 = vcmp.lt.s32.totalorder %v380, 0
        %v382 = vsub.s32 0, %v380
        %v383 = vsel %vm381, %v382, %v380
        %v384 = vclz %v383
        %v385 = vsub.s32 %v384, 2
        %vm386 = vcmp.gt.s32.totalorder 0, %v385
        %v387 = vsel %vm386, 0, %v385
        %v388 = vsub.s32 32, %v387
        %v389 = vshll.u32 %v380, %v387
        %v390 = vshrl.u32 %v372, %v388
        %v391 = vor.u32 %v389, %v390
        %v392 = vsub.s32 4294967266, %v387
        %v393 = vadd.s32 %v392, 127
        %v394 = vshll.u32 %v393, 23
        %v395 = vor.u32 4788187, %v394
        %v396 = vand.u32 2147483647, %v395
        %v398 = vcvt.s32.f32 %v391
        %v399 = vmul.f32 %v398, %v396
        %v400 = vxor.u32 %v399, 2147483648
        %v401 = vsel %vm318, %v400, %v399
        %v402 = vsub.s32 4, %v378
        %v403 = vsel %vm318, %v402, %v378
        %v404 = vsel %vm317, %v202, %v401
        %v405 = vsel %vm317, 0, %v403
        %v406 = vcosq.f32.pop %v404
        %v407 = vsinq.f32.pop %v404
        %vm408 = vweird.f32 %v202
        %v409 = vadd.s32 %v405, 3
        %v410 = vand.u32 %v409, 3
        %vm411 = vcmp.lt.s32.totalorder %v410, 2
        %vm412 = vcmp.eq.s32.totalorder %v410, 0
        %v413 = vxor.u32 %v407, 2147483648
        %v414 = vsel %vm412, %v406, %v413
        %vm415 = vcmp.eq.s32.totalorder %v410, 2
        %v416 = vxor.u32 %v406, 2147483648
        %v417 = vsel %vm415, %v416, %v407
        %v418 = vsel %vm411, %v414, %v417
        %v419 = vsel %vm408, nan, %v418
        %v420 = vand.u32 2147483647, %v203
        %vm421 = vcmp.le.f32.partialorder %v420, 0.7853982
        %vm422 = vcmp.lt.s32.totalorder %v203, 0
        %v423 = vand.u32 %v203, 2139095040
        %v424 = vshrl.u32 %v423, 23
        %v425 = vsub.s32 %v424, 127
        %v426 = vand.u32 2147483647, %v203
        %v427 = vand.u32 %v426, 8388607
        %v428 = vor.u32 %v427, 8388608
        %v429 = vsub.s32 0, %v428
        %v430 = vadd.s32 %v425, 1
        %vm431 = vcmp.gt.s32.totalorder %v430, 0
        %v432 = vsel %vm431, %v430, 0
        %v433 = vshrl.u32 %v432, 5
        %v434 = vand.u32 %v432, 31
        %v435 = vsub.s32 32, %v434
        %v436 = vshrl.u32 683565275, %v435
        %v437 = vshll.u32 683565275, %v434
        %v438 = vshrl.u32 2475754826, %v435
        %v439 = vor.u32 %v437, %v438
        %v440 = vshll.u32 2475754826, %v434
        %v441 = vshrl.u32 2131351028, %v435
        %v442 = vor.u32 %v440, %v441
        %v443 = vshll.u32 2131351028, %v434
        %v444 = vshrl.u32 2102212464, %v435
        %v445 = vor.u32 %v443, %v444
        %v446 = vshll.u32 2102212464, %v434
        %v447 = vshrl.u32 920167782, %v435
        %v448 = vor.u32 %v446, %v447
        %v449 = vshll.u32 920167782, %v434
        %v450 = vshrl.u32 1326507024, %v435
        %v451 = vor.u32 %v449, %v450
        %vm452 = vcmp.lt.s32.totalorder %v433, 1
        %vm453 = vcmp.lt.s32.totalorder %v433, 2
        %vm454 = vcmp.lt.s32.totalorder %v433, 3
        %vm455 = vcmp.lt.s32.totalorder %v433, 4
        %v456 = vsel %vm452, %v436, %v439
        %v457 = vsel %vm455, %v445, 2102212464
        %v458 = vsel %vm454, %v442, %v457
        %v459 = vsel %vm453, %v456, %v458
        %v460 = vsel %vm452, %v439, %v442
        %v461 = vsel %vm455, %v448, 920167782
        %v462 = vsel %vm454, %v445, %v461
        %v463 = vsel %vm453, %v460, %v462
        %v464 = vsel %vm452, %v442, %v445
        %v465 = vsel %vm455, %v451, 1326507024
        %v466 = vsel %vm454, %v448, %v465
        %v467 = vsel %vm453, %v464, %v466
        %v468 = vshll.u32 %v428, 8
        %v469 = vmul.u32.u64.compose %v468, %v467
        %v470 = vextract.low.u32 %v469
        %v471 = vextract.high.u32 %v469
        %v472 = vmul.u32.u64.compose %v468, %v463
        %v473 = vextract.low.u32 %v472
        %v474 = vextract.high.u32 %v472
        %v475 = vmul.u32 %v468, %v459
        %v476 = vadd.s32 %v471, %v473
        %vm477 = vc.u32 %v471, %v473
        %v478 = vadd.s32 %v474, 1
        %v479 = vsel %vm477, %v478, %v474
        %v480 = vadd.s32 %v475, %v479
        %v481 = vadd.s32 %v480, 536870912
        %v482 = vshrl.u32 %v481, 30
        %v483 = vshll.u32 %v482, 30
        %v484 = vsub.s32 %v480, %v483
        %vm485 = vcmp.lt.s32.totalorder %v484, 0
        %v486 = vsub.s32 0, %v484
        %v487 = vsel %vm485, %v486, %v484
        %v488 = vclz %v487
        %v489 = vsub.s32 %v488, 2
        %vm490 = vcmp.gt.s32.totalorder 0, %v489
        %v491 = vsel %vm490, 0, %v489
        %v492 = vsub.s32 32, %v491
        %v493 = vshll.u32 %v484, %v491
        %v494 = vshrl.u32 %v476, %v492
        %v495 = vor.u32 %v493, %v494
        %v496 = vsub.s32 4294967266, %v491
        %v497 = vadd.s32 %v496, 127
        %v498 = vshll.u32 %v497, 23
        %v499 = vor.u32 4788187, %v498
        %v500 = vand.u32 2147483647, %v499
        %v502 = vcvt.s32.f32 %v495
        %v503 = vmul.f32 %v502, %v500
        %v504 = vxor.u32 %v503, 2147483648
        %v505 = vsel %vm422, %v504, %v503
        %v506 = vsub.s32 4, %v482
        %v507 = vsel %vm422, %v506, %v482
        %v508 = vsel %vm421, %v203, %v505
        %v509 = vsel %vm421, 0, %v507
        %v510 = vcosq.f32.pop %v508
        %v511 = vsinq.f32.pop %v508
        %vm512 = vweird.f32 %v203
        %v513 = vadd.s32 %v509, 3
        %v514 = vand.u32 %v513, 3
        %vm515 = vcmp.lt.s32.totalorder %v514, 2
        %vm516 = vcmp.eq.s32.totalorder %v514, 0
        %v517 = vxor.u32 %v511, 2147483648
        %v518 = vsel %vm516, %v510, %v517
        %vm519 = vcmp.eq.s32.totalorder %v514, 2
        %v520 = vxor.u32 %v510, 2147483648
        %v521 = vsel %vm519, %v520, %v511
        %v522 = vsel %vm515, %v518, %v521
        %v523 = vsel %vm512, nan, %v522
        %v524 = vand.u32 2147483647, %v209
        %vm525 = vcmp.le.f32.partialorder %v524, 0.7853982
        %vm526 = vcmp.lt.s32.totalorder %v209, 0
        %v527 = vand.u32 %v209, 2139095040
        %v528 = vshrl.u32 %v527, 23
        %v529 = vsub.s32 %v528, 127
        %v530 = vand.u32 2147483647, %v209
        %v531 = vand.u32 %v530, 8388607
        %v532 = vor.u32 %v531, 8388608
        %v533 = vsub.s32 0, %v532
        %v534 = vadd.s32 %v529, 1
        %vm535 = vcmp.gt.s32.totalorder %v534, 0
        %v536 = vsel %vm535, %v534, 0
        %v537 = vshrl.u32 %v536, 5
        %v538 = vand.u32 %v536, 31
        %v539 = vsub.s32 32, %v538
        %v540 = vshrl.u32 683565275, %v539
        %v541 = vshll.u32 683565275, %v538
        %v542 = vshrl.u32 2475754826, %v539
        %v543 = vor.u32 %v541, %v542
        %v544 = vshll.u32 2475754826, %v538
        %v545 = vshrl.u32 2131351028, %v539
        %v546 = vor.u32 %v544, %v545
        %v547 = vshll.u32 2131351028, %v538
        %v548 = vshrl.u32 2102212464, %v539
        %v549 = vor.u32 %v547, %v548
        %v550 = vshll.u32 2102212464, %v538
        %v551 = vshrl.u32 920167782, %v539
        %v552 = vor.u32 %v550, %v551
        %v553 = vshll.u32 920167782, %v538
        %v554 = vshrl.u32 1326507024, %v539
        %v555 = vor.u32 %v553, %v554
        %vm556 = vcmp.lt.s32.totalorder %v537, 1
        %vm557 = vcmp.lt.s32.totalorder %v537, 2
        %vm558 = vcmp.lt.s32.totalorder %v537, 3
        %vm559 = vcmp.lt.s32.totalorder %v537, 4
        %v560 = vsel %vm556, %v540, %v543
        %v561 = vsel %vm559, %v549, 2102212464
        %v562 = vsel %vm558, %v546, %v561
        %v563 = vsel %vm557, %v560, %v562
        %v564 = vsel %vm556, %v543, %v546
        %v565 = vsel %vm559, %v552, 920167782
        %v566 = vsel %vm558, %v549, %v565
        %v567 = vsel %vm557, %v564, %v566
        %v568 = vsel %vm556, %v546, %v549
        %v569 = vsel %vm559, %v555, 1326507024
        %v570 = vsel %vm558, %v552, %v569
        %v571 = vsel %vm557, %v568, %v570
        %v572 = vshll.u32 %v532, 8
        %v573 = vmul.u32.u64.compose %v572, %v571
        %v574 = vextract.low.u32 %v573
        %v575 = vextract.high.u32 %v573
        %v576 = vmul.u32.u64.compose %v572, %v567
        %v577 = vextract.low.u32 %v576
        %v578 = vextract.high.u32 %v576
        %v579 = vmul.u32 %v572, %v563
        %v580 = vadd.s32 %v575, %v577
        %vm581 = vc.u32 %v575, %v577
        %v582 = vadd.s32 %v578, 1
        %v583 = vsel %vm581, %v582, %v578
        %v584 = vadd.s32 %v579, %v583
        %v585 = vadd.s32 %v584, 536870912
        %v586 = vshrl.u32 %v585, 30
        %v587 = vshll.u32 %v586, 30
        %v588 = vsub.s32 %v584, %v587
        %vm589 = vcmp.lt.s32.totalorder %v588, 0
        %v590 = vsub.s32 0, %v588
        %v591 = vsel %vm589, %v590, %v588
        %v592 = vclz %v591
        %v593 = vsub.s32 %v592, 2
        %vm594 = vcmp.gt.s32.totalorder 0, %v593
        %v595 = vsel %vm594, 0, %v593
        %v596 = vsub.s32 32, %v595
        %v597 = vshll.u32 %v588, %v595
        %v598 = vshrl.u32 %v580, %v596
        %v599 = vor.u32 %v597, %v598
        %v600 = vsub.s32 4294967266, %v595
        %v601 = vadd.s32 %v600, 127
        %v602 = vshll.u32 %v601, 23
        %v603 = vor.u32 4788187, %v602
        %v604 = vand.u32 2147483647, %v603
        %v606 = vcvt.s32.f32 %v599
        %v607 = vmul.f32 %v606, %v604
        %v608 = vxor.u32 %v607, 2147483648
        %v609 = vsel %vm526, %v608, %v607
        %v610 = vsub.s32 4, %v586
        %v611 = vsel %vm526, %v610, %v586
        %v612 = vsel %vm525, %v209, %v609
        %v613 = vsel %vm525, 0, %v611
        %v614 = vcosq.f32.pop %v612
        %v615 = vsinq.f32.pop %v612
        %vm616 = vweird.f32 %v209
        %v617 = vadd.s32 %v613, 3
        %v618 = vand.u32 %v617, 3
        %vm619 = vcmp.lt.s32.totalorder %v618, 2
        %vm620 = vcmp.eq.s32.totalorder %v618, 0
        %v621 = vxor.u32 %v615, 2147483648
        %v622 = vsel %vm620, %v614, %v621
        %vm623 = vcmp.eq.s32.totalorder %v618, 2
        %v624 = vxor.u32 %v614, 2147483648
        %v625 = vsel %vm623, %v624, %v615
        %v626 = vsel %vm619, %v622, %v625
        %v627 = vsel %vm616, nan, %v626
        %v628 = vand.u32 2147483647, %v210
        %vm629 = vcmp.le.f32.partialorder %v628, 0.7853982
        %vm630 = vcmp.lt.s32.totalorder %v210, 0
        %v631 = vand.u32 %v210, 2139095040
        %v632 = vshrl.u32 %v631, 23
        %v633 = vsub.s32 %v632, 127
        %v634 = vand.u32 2147483647, %v210
        %v635 = vand.u32 %v634, 8388607
        %v636 = vor.u32 %v635, 8388608
        %v637 = vsub.s32 0, %v636
        %v638 = vadd.s32 %v633, 1
        %vm639 = vcmp.gt.s32.totalorder %v638, 0
        %v640 = vsel %vm639, %v638, 0
        %v641 = vshrl.u32 %v640, 5
        %v642 = vand.u32 %v640, 31
        %v643 = vsub.s32 32, %v642
        %v644 = vshrl.u32 683565275, %v643
        %v645 = vshll.u32 683565275, %v642
        %v646 = vshrl.u32 2475754826, %v643
        %v647 = vor.u32 %v645, %v646
        %v648 = vshll.u32 2475754826, %v642
        %v649 = vshrl.u32 2131351028, %v643
        %v650 = vor.u32 %v648, %v649
        %v651 = vshll.u32 2131351028, %v642
        %v652 = vshrl.u32 2102212464, %v643
        %v653 = vor.u32 %v651, %v652
        %v654 = vshll.u32 2102212464, %v642
        %v655 = vshrl.u32 920167782, %v643
        %v656 = vor.u32 %v654, %v655
        %v657 = vshll.u32 920167782, %v642
        %v658 = vshrl.u32 1326507024, %v643
        %v659 = vor.u32 %v657, %v658
        %vm660 = vcmp.lt.s32.totalorder %v641, 1
        %vm661 = vcmp.lt.s32.totalorder %v641, 2
        %vm662 = vcmp.lt.s32.totalorder %v641, 3
        %vm663 = vcmp.lt.s32.totalorder %v641, 4
        %v664 = vsel %vm660, %v644, %v647
        %v665 = vsel %vm663, %v653, 2102212464
        %v666 = vsel %vm662, %v650, %v665
        %v667 = vsel %vm661, %v664, %v666
        %v668 = vsel %vm660, %v647, %v650
        %v669 = vsel %vm663, %v656, 920167782
        %v670 = vsel %vm662, %v653, %v669
        %v671 = vsel %vm661, %v668, %v670
        %v672 = vsel %vm660, %v650, %v653
        %v673 = vsel %vm663, %v659, 1326507024
        %v674 = vsel %vm662, %v656, %v673
        %v675 = vsel %vm661, %v672, %v674
        %v676 = vshll.u32 %v636, 8
        %v677 = vmul.u32.u64.compose %v676, %v675
        %v678 = vextract.low.u32 %v677
        %v679 = vextract.high.u32 %v677
        %v680 = vmul.u32.u64.compose %v676, %v671
        %v681 = vextract.low.u32 %v680
        %v682 = vextract.high.u32 %v680
        %v683 = vmul.u32 %v676, %v667
        %v684 = vadd.s32 %v679, %v681
        %vm685 = vc.u32 %v679, %v681
        %v686 = vadd.s32 %v682, 1
        %v687 = vsel %vm685, %v686, %v682
        %v688 = vadd.s32 %v683, %v687
        %v689 = vadd.s32 %v688, 536870912
        %v690 = vshrl.u32 %v689, 30
        %v691 = vshll.u32 %v690, 30
        %v692 = vsub.s32 %v688, %v691
        %vm693 = vcmp.lt.s32.totalorder %v692, 0
        %v694 = vsub.s32 0, %v692
        %v695 = vsel %vm693, %v694, %v692
        %v696 = vclz %v695
        %v697 = vsub.s32 %v696, 2
        %vm698 = vcmp.gt.s32.totalorder 0, %v697
        %v699 = vsel %vm698, 0, %v697
        %v700 = vsub.s32 32, %v699
        %v701 = vshll.u32 %v692, %v699
        %v702 = vshrl.u32 %v684, %v700
        %v703 = vor.u32 %v701, %v702
        %v704 = vsub.s32 4294967266, %v699
        %v705 = vadd.s32 %v704, 127
        %v706 = vshll.u32 %v705, 23
        %v707 = vor.u32 4788187, %v706
        %v708 = vand.u32 2147483647, %v707
        %v710 = vcvt.s32.f32 %v703
        %v711 = vmul.f32 %v710, %v708
        %v712 = vxor.u32 %v711, 2147483648
        %v713 = vsel %vm630, %v712, %v711
        %v714 = vsub.s32 4, %v690
        %v715 = vsel %vm630, %v714, %v690
        %v716 = vsel %vm629, %v210, %v713
        %v717 = vsel %vm629, 0, %v715
        %v718 = vcosq.f32.pop %v716
        %v719 = vsinq.f32.pop %v716
        %vm720 = vweird.f32 %v210
        %v721 = vadd.s32 %v717, 3
        %v722 = vand.u32 %v721, 3
        %vm723 = vcmp.lt.s32.totalorder %v722, 2
        %vm724 = vcmp.eq.s32.totalorder %v722, 0
        %v725 = vxor.u32 %v719, 2147483648
        %v726 = vsel %vm724, %v718, %v725
        %vm727 = vcmp.eq.s32.totalorder %v722, 2
        %v728 = vxor.u32 %v718, 2147483648
        %v729 = vsel %vm727, %v728, %v719
        %v730 = vsel %vm723, %v726, %v729
        %v731 = vsel %vm720, nan, %v730
        %v732 = vand.u32 2147483647, %v211
        %vm733 = vcmp.le.f32.partialorder %v732, 0.7853982
        %vm734 = vcmp.lt.s32.totalorder %v211, 0
        %v735 = vand.u32 %v211, 2139095040
        %v736 = vshrl.u32 %v735, 23
        %v737 = vsub.s32 %v736, 127
        %v738 = vand.u32 2147483647, %v211
        %v739 = vand.u32 %v738, 8388607
        %v740 = vor.u32 %v739, 8388608
        %v741 = vsub.s32 0, %v740
        %v742 = vadd.s32 %v737, 1
        %vm743 = vcmp.gt.s32.totalorder %v742, 0
        %v744 = vsel %vm743, %v742, 0
        %v745 = vshrl.u32 %v744, 5
        %v746 = vand.u32 %v744, 31
        %v747 = vsub.s32 32, %v746
        %v748 = vshrl.u32 683565275, %v747
        %v749 = vshll.u32 683565275, %v746
        %v750 = vshrl.u32 2475754826, %v747
        %v751 = vor.u32 %v749, %v750
        %v752 = vshll.u32 2475754826, %v746
        %v753 = vshrl.u32 2131351028, %v747
        %v754 = vor.u32 %v752, %v753
        %v755 = vshll.u32 2131351028, %v746
        %v756 = vshrl.u32 2102212464, %v747
        %v757 = vor.u32 %v755, %v756
        %v758 = vshll.u32 2102212464, %v746
        %v759 = vshrl.u32 920167782, %v747
        %v760 = vor.u32 %v758, %v759
        %v761 = vshll.u32 920167782, %v746
        %v762 = vshrl.u32 1326507024, %v747
        %v763 = vor.u32 %v761, %v762
        %vm764 = vcmp.lt.s32.totalorder %v745, 1
        %vm765 = vcmp.lt.s32.totalorder %v745, 2
        %vm766 = vcmp.lt.s32.totalorder %v745, 3
        %vm767 = vcmp.lt.s32.totalorder %v745, 4
        %v768 = vsel %vm764, %v748, %v751
        %v769 = vsel %vm767, %v757, 2102212464
        %v770 = vsel %vm766, %v754, %v769
        %v771 = vsel %vm765, %v768, %v770
        %v772 = vsel %vm764, %v751, %v754
        %v773 = vsel %vm767, %v760, 920167782
        %v774 = vsel %vm766, %v757, %v773
        %v775 = vsel %vm765, %v772, %v774
        %v776 = vsel %vm764, %v754, %v757
        %v777 = vsel %vm767, %v763, 1326507024
        %v778 = vsel %vm766, %v760, %v777
        %v779 = vsel %vm765, %v776, %v778
        %v780 = vshll.u32 %v740, 8
        %v781 = vmul.u32.u64.compose %v780, %v779
        %v782 = vextract.low.u32 %v781
        %v783 = vextract.high.u32 %v781
        %v784 = vmul.u32.u64.compose %v780, %v775
        %v785 = vextract.low.u32 %v784
        %v786 = vextract.high.u32 %v784
        %v787 = vmul.u32 %v780, %v771
        %v788 = vadd.s32 %v783, %v785
        %vm789 = vc.u32 %v783, %v785
        %v790 = vadd.s32 %v786, 1
        %v791 = vsel %vm789, %v790, %v786
        %v792 = vadd.s32 %v787, %v791
        %v793 = vadd.s32 %v792, 536870912
        %v794 = vshrl.u32 %v793, 30
        %v795 = vshll.u32 %v794, 30
        %v796 = vsub.s32 %v792, %v795
        %vm797 = vcmp.lt.s32.totalorder %v796, 0
        %v798 = vsub.s32 0, %v796
        %v799 = vsel %vm797, %v798, %v796
        %v800 = vclz %v799
        %v801 = vsub.s32 %v800, 2
        %vm802 = vcmp.gt.s32.totalorder 0, %v801
        %v803 = vsel %vm802, 0, %v801
        %v804 = vsub.s32 32, %v803
        %v805 = vshll.u32 %v796, %v803
        %v806 = vshrl.u32 %v788, %v804
        %v807 = vor.u32 %v805, %v806
        %v808 = vsub.s32 4294967266, %v803
        %v809 = vadd.s32 %v808, 127
        %v810 = vshll.u32 %v809, 23
        %v811 = vor.u32 4788187, %v810
        %v812 = vand.u32 2147483647, %v811
        %v814 = vcvt.s32.f32 %v807
        %v815 = vmul.f32 %v814, %v812
        %v816 = vxor.u32 %v815, 2147483648
        %v817 = vsel %vm734, %v816, %v815
        %v818 = vsub.s32 4, %v794
        %v819 = vsel %vm734, %v818, %v794
        %v820 = vsel %vm733, %v211, %v817
        %v821 = vsel %vm733, 0, %v819
        %v822 = vcosq.f32.pop %v820
        %v823 = vsinq.f32.pop %v820
        %vm824 = vweird.f32 %v211
        %v825 = vadd.s32 %v821, 3
        %v826 = vand.u32 %v825, 3
        %vm827 = vcmp.lt.s32.totalorder %v826, 2
        %vm828 = vcmp.eq.s32.totalorder %v826, 0
        %v829 = vxor.u32 %v823, 2147483648
        %v830 = vsel %vm828, %v822, %v829
        %vm831 = vcmp.eq.s32.totalorder %v826, 2
        %v832 = vxor.u32 %v822, 2147483648
        %v833 = vsel %vm831, %v832, %v823
        %v834 = vsel %vm827, %v830, %v833
        %v835 = vsel %vm824, nan, %v834
        %v836 = vand.u32 2147483647, %v201
        %vm837 = vcmp.le.f32.partialorder %v836, 0.7853982
        %vm838 = vcmp.lt.s32.totalorder %v201, 0
        %v839 = vand.u32 %v201, 2139095040
        %v840 = vshrl.u32 %v839, 23
        %v841 = vsub.s32 %v840, 127
        %v842 = vand.u32 2147483647, %v201
        %v843 = vand.u32 %v842, 8388607
        %v844 = vor.u32 %v843, 8388608
        %v845 = vsub.s32 0, %v844
        %v846 = vadd.s32 %v841, 1
        %vm847 = vcmp.gt.s32.totalorder %v846, 0
        %v848 = vsel %vm847, %v846, 0
        %v849 = vshrl.u32 %v848, 5
        %v850 = vand.u32 %v848, 31
        %v851 = vsub.s32 32, %v850
        %v852 = vshrl.u32 683565275, %v851
        %v853 = vshll.u32 683565275, %v850
        %v854 = vshrl.u32 2475754826, %v851
        %v855 = vor.u32 %v853, %v854
        %v856 = vshll.u32 2475754826, %v850
        %v857 = vshrl.u32 2131351028, %v851
        %v858 = vor.u32 %v856, %v857
        %v859 = vshll.u32 2131351028, %v850
        %v860 = vshrl.u32 2102212464, %v851
        %v861 = vor.u32 %v859, %v860
        %v862 = vshll.u32 2102212464, %v850
        %v863 = vshrl.u32 920167782, %v851
        %v864 = vor.u32 %v862, %v863
        %v865 = vshll.u32 920167782, %v850
        %v866 = vshrl.u32 1326507024, %v851
        %v867 = vor.u32 %v865, %v866
        %vm868 = vcmp.lt.s32.totalorder %v849, 1
        %vm869 = vcmp.lt.s32.totalorder %v849, 2
        %vm870 = vcmp.lt.s32.totalorder %v849, 3
        %vm871 = vcmp.lt.s32.totalorder %v849, 4
        %v872 = vsel %vm868, %v852, %v855
        %v873 = vsel %vm871, %v861, 2102212464
        %v874 = vsel %vm870, %v858, %v873
        %v875 = vsel %vm869, %v872, %v874
        %v876 = vsel %vm868, %v855, %v858
        %v877 = vsel %vm871, %v864, 920167782
        %v878 = vsel %vm870, %v861, %v877
        %v879 = vsel %vm869, %v876, %v878
        %v880 = vsel %vm868, %v858, %v861
        %v881 = vsel %vm871, %v867, 1326507024
        %v882 = vsel %vm870, %v864, %v881
        %v883 = vsel %vm869, %v880, %v882
        %v884 = vshll.u32 %v844, 8
        %v885 = vmul.u32.u64.compose %v884, %v883
        %v886 = vextract.low.u32 %v885
        %v887 = vextract.high.u32 %v885
        %v888 = vmul.u32.u64.compose %v884, %v879
        %v889 = vextract.low.u32 %v888
        %v890 = vextract.high.u32 %v888
        %v891 = vmul.u32 %v884, %v875
        %v892 = vadd.s32 %v887, %v889
        %vm893 = vc.u32 %v887, %v889
        %v894 = vadd.s32 %v890, 1
        %v895 = vsel %vm893, %v894, %v890
        %v896 = vadd.s32 %v891, %v895
        %v897 = vadd.s32 %v896, 536870912
        %v898 = vshrl.u32 %v897, 30
        %v899 = vshll.u32 %v898, 30
        %v900 = vsub.s32 %v896, %v899
        %vm901 = vcmp.lt.s32.totalorder %v900, 0
        %v902 = vsub.s32 0, %v900
        %v903 = vsel %vm901, %v902, %v900
        %v904 = vclz %v903
        %v905 = vsub.s32 %v904, 2
        %vm906 = vcmp.gt.s32.totalorder 0, %v905
        %v907 = vsel %vm906, 0, %v905
        %v908 = vsub.s32 32, %v907
        %v909 = vshll.u32 %v900, %v907
        %v910 = vshrl.u32 %v892, %v908
        %v911 = vor.u32 %v909, %v910
        %v912 = vsub.s32 4294967266, %v907
        %v913 = vadd.s32 %v912, 127
        %v914 = vshll.u32 %v913, 23
        %v915 = vor.u32 4788187, %v914
        %v916 = vand.u32 2147483647, %v915
        %v918 = vcvt.s32.f32 %v911
        %v919 = vmul.f32 %v918, %v916
        %v920 = vxor.u32 %v919, 2147483648
        %v921 = vsel %vm838, %v920, %v919
        %v922 = vsub.s32 4, %v898
        %v923 = vsel %vm838, %v922, %v898
        %v924 = vsel %vm837, %v201, %v921
        %v925 = vsel %vm837, 0, %v923
        %v926 = vcosq.f32.pop %v924
        %v927 = vsinq.f32.pop %v924
        %vm928 = vweird.f32 %v201
        %v929 = vand.u32 %v925, 3
        %vm930 = vcmp.lt.s32.totalorder %v929, 2
        %vm931 = vcmp.eq.s32.totalorder %v929, 0
        %v932 = vxor.u32 %v927, 2147483648
        %v933 = vsel %vm931, %v926, %v932
        %vm934 = vcmp.eq.s32.totalorder %v929, 2
        %v935 = vxor.u32 %v926, 2147483648
        %v936 = vsel %vm934, %v935, %v927
        %v937 = vsel %vm930, %v933, %v936
        %v938 = vsel %vm928, nan, %v937
        %v939 = vand.u32 2147483647, %v202
        %vm940 = vcmp.le.f32.partialorder %v939, 0.7853982
        %vm941 = vcmp.lt.s32.totalorder %v202, 0
        %v942 = vand.u32 %v202, 2139095040
        %v943 = vshrl.u32 %v942, 23
        %v944 = vsub.s32 %v943, 127
        %v945 = vand.u32 2147483647, %v202
        %v946 = vand.u32 %v945, 8388607
        %v947 = vor.u32 %v946, 8388608
        %v948 = vsub.s32 0, %v947
        %v949 = vadd.s32 %v944, 1
        %vm950 = vcmp.gt.s32.totalorder %v949, 0
        %v951 = vsel %vm950, %v949, 0
        %v952 = vshrl.u32 %v951, 5
        %v953 = vand.u32 %v951, 31
        %v954 = vsub.s32 32, %v953
        %v955 = vshrl.u32 683565275, %v954
        %v956 = vshll.u32 683565275, %v953
        %v957 = vshrl.u32 2475754826, %v954
        %v958 = vor.u32 %v956, %v957
        %v959 = vshll.u32 2475754826, %v953
        %v960 = vshrl.u32 2131351028, %v954
        %v961 = vor.u32 %v959, %v960
        %v962 = vshll.u32 2131351028, %v953
        %v963 = vshrl.u32 2102212464, %v954
        %v964 = vor.u32 %v962, %v963
        %v965 = vshll.u32 2102212464, %v953
        %v966 = vshrl.u32 920167782, %v954
        %v967 = vor.u32 %v965, %v966
        %v968 = vshll.u32 920167782, %v953
        %v969 = vshrl.u32 1326507024, %v954
        %v970 = vor.u32 %v968, %v969
        %vm971 = vcmp.lt.s32.totalorder %v952, 1
        %vm972 = vcmp.lt.s32.totalorder %v952, 2
        %vm973 = vcmp.lt.s32.totalorder %v952, 3
        %vm974 = vcmp.lt.s32.totalorder %v952, 4
        %v975 = vsel %vm971, %v955, %v958
        %v976 = vsel %vm974, %v964, 2102212464
        %v977 = vsel %vm973, %v961, %v976
        %v978 = vsel %vm972, %v975, %v977
        %v979 = vsel %vm971, %v958, %v961
        %v980 = vsel %vm974, %v967, 920167782
        %v981 = vsel %vm973, %v964, %v980
        %v982 = vsel %vm972, %v979, %v981
        %v983 = vsel %vm971, %v961, %v964
        %v984 = vsel %vm974, %v970, 1326507024
        %v985 = vsel %vm973, %v967, %v984
        %v986 = vsel %vm972, %v983, %v985
        %v987 = vshll.u32 %v947, 8
        %v988 = vmul.u32.u64.compose %v987, %v986
        %v989 = vextract.low.u32 %v988
        %v990 = vextract.high.u32 %v988
        %v991 = vmul.u32.u64.compose %v987, %v982
        %v992 = vextract.low.u32 %v991
        %v993 = vextract.high.u32 %v991
        %v994 = vmul.u32 %v987, %v978
        %v995 = vadd.s32 %v990, %v992
        %vm996 = vc.u32 %v990, %v992
        %v997 = vadd.s32 %v993, 1
        %v998 = vsel %vm996, %v997, %v993
        %v999 = vadd.s32 %v994, %v998
        %v1000 = vadd.s32 %v999, 536870912
        %v1001 = vshrl.u32 %v1000, 30
        %v1002 = vshll.u32 %v1001, 30
        %v1003 = vsub.s32 %v999, %v1002
        %vm1004 = vcmp.lt.s32.totalorder %v1003, 0
        %v1005 = vsub.s32 0, %v1003
        %v1006 = vsel %vm1004, %v1005, %v1003
        %v1007 = vclz %v1006
        %v1008 = vsub.s32 %v1007, 2
        %vm1009 = vcmp.gt.s32.totalorder 0, %v1008
        %v1010 = vsel %vm1009, 0, %v1008
        %v1011 = vsub.s32 32, %v1010
        %v1012 = vshll.u32 %v1003, %v1010
        %v1013 = vshrl.u32 %v995, %v1011
        %v1014 = vor.u32 %v1012, %v1013
        %v1015 = vsub.s32 4294967266, %v1010
        %v1016 = vadd.s32 %v1015, 127
        %v1017 = vshll.u32 %v1016, 23
        %v1018 = vor.u32 4788187, %v1017
        %v1019 = vand.u32 2147483647, %v1018
        %v1021 = vcvt.s32.f32 %v1014
        %v1022 = vmul.f32 %v1021, %v1019
        %v1023 = vxor.u32 %v1022, 2147483648
        %v1024 = vsel %vm941, %v1023, %v1022
        %v1025 = vsub.s32 4, %v1001
        %v1026 = vsel %vm941, %v1025, %v1001
        %v1027 = vsel %vm940, %v202, %v1024
        %v1028 = vsel %vm940, 0, %v1026
        %v1029 = vcosq.f32.pop %v1027
        %v1030 = vsinq.f32.pop %v1027
        %vm1031 = vweird.f32 %v202
        %v1032 = vand.u32 %v1028, 3
        %vm1033 = vcmp.lt.s32.totalorder %v1032, 2
        %vm1034 = vcmp.eq.s32.totalorder %v1032, 0
        %v1035 = vxor.u32 %v1030, 2147483648
        %v1036 = vsel %vm1034, %v1029, %v1035
        %vm1037 = vcmp.eq.s32.totalorder %v1032, 2
        %v1038 = vxor.u32 %v1029, 2147483648
        %v1039 = vsel %vm1037, %v1038, %v1030
        %v1040 = vsel %vm1033, %v1036, %v1039
        %v1041 = vsel %vm1031, nan, %v1040
        %v1042 = vand.u32 2147483647, %v203
        %vm1043 = vcmp.le.f32.partialorder %v1042, 0.7853982
        %vm1044 = vcmp.lt.s32.totalorder %v203, 0
        %v1045 = vand.u32 %v203, 2139095040
        %v1046 = vshrl.u32 %v1045, 23
        %v1047 = vsub.s32 %v1046, 127
        %v1048 = vand.u32 2147483647, %v203
        %v1049 = vand.u32 %v1048, 8388607
        %v1050 = vor.u32 %v1049, 8388608
        %v1051 = vsub.s32 0, %v1050
        %v1052 = vadd.s32 %v1047, 1
        %vm1053 = vcmp.gt.s32.totalorder %v1052, 0
        %v1054 = vsel %vm1053, %v1052, 0
        %v1055 = vshrl.u32 %v1054, 5
        %v1056 = vand.u32 %v1054, 31
        %v1057 = vsub.s32 32, %v1056
        %v1058 = vshrl.u32 683565275, %v1057
        %v1059 = vshll.u32 683565275, %v1056
        %v1060 = vshrl.u32 2475754826, %v1057
        %v1061 = vor.u32 %v1059, %v1060
        %v1062 = vshll.u32 2475754826, %v1056
        %v1063 = vshrl.u32 2131351028, %v1057
        %v1064 = vor.u32 %v1062, %v1063
        %v1065 = vshll.u32 2131351028, %v1056
        %v1066 = vshrl.u32 2102212464, %v1057
        %v1067 = vor.u32 %v1065, %v1066
        %v1068 = vshll.u32 2102212464, %v1056
        %v1069 = vshrl.u32 920167782, %v1057
        %v1070 = vor.u32 %v1068, %v1069
        %v1071 = vshll.u32 920167782, %v1056
        %v1072 = vshrl.u32 1326507024, %v1057
        %v1073 = vor.u32 %v1071, %v1072
        %vm1074 = vcmp.lt.s32.totalorder %v1055, 1
        %vm1075 = vcmp.lt.s32.totalorder %v1055, 2
        %vm1076 = vcmp.lt.s32.totalorder %v1055, 3
        %vm1077 = vcmp.lt.s32.totalorder %v1055, 4
        %v1078 = vsel %vm1074, %v1058, %v1061
        %v1079 = vsel %vm1077, %v1067, 2102212464
        %v1080 = vsel %vm1076, %v1064, %v1079
        %v1081 = vsel %vm1075, %v1078, %v1080
        %v1082 = vsel %vm1074, %v1061, %v1064
        %v1083 = vsel %vm1077, %v1070, 920167782
        %v1084 = vsel %vm1076, %v1067, %v1083
        %v1085 = vsel %vm1075, %v1082, %v1084
        %v1086 = vsel %vm1074, %v1064, %v1067
        %v1087 = vsel %vm1077, %v1073, 1326507024
        %v1088 = vsel %vm1076, %v1070, %v1087
        %v1089 = vsel %vm1075, %v1086, %v1088
        %v1090 = vshll.u32 %v1050, 8
        %v1091 = vmul.u32.u64.compose %v1090, %v1089
        %v1092 = vextract.low.u32 %v1091
        %v1093 = vextract.high.u32 %v1091
        %v1094 = vmul.u32.u64.compose %v1090, %v1085
        %v1095 = vextract.low.u32 %v1094
        %v1096 = vextract.high.u32 %v1094
        %v1097 = vmul.u32 %v1090, %v1081
        %v1098 = vadd.s32 %v1093, %v1095
        %vm1099 = vc.u32 %v1093, %v1095
        %v1100 = vadd.s32 %v1096, 1
        %v1101 = vsel %vm1099, %v1100, %v1096
        %v1102 = vadd.s32 %v1097, %v1101
        %v1103 = vadd.s32 %v1102, 536870912
        %v1104 = vshrl.u32 %v1103, 30
        %v1105 = vshll.u32 %v1104, 30
        %v1106 = vsub.s32 %v1102, %v1105
        %vm1107 = vcmp.lt.s32.totalorder %v1106, 0
        %v1108 = vsub.s32 0, %v1106
        %v1109 = vsel %vm1107, %v1108, %v1106
        %v1110 = vclz %v1109
        %v1111 = vsub.s32 %v1110, 2
        %vm1112 = vcmp.gt.s32.totalorder 0, %v1111
        %v1113 = vsel %vm1112, 0, %v1111
        %v1114 = vsub.s32 32, %v1113
        %v1115 = vshll.u32 %v1106, %v1113
        %v1116 = vshrl.u32 %v1098, %v1114
        %v1117 = vor.u32 %v1115, %v1116
        %v1118 = vsub.s32 4294967266, %v1113
        %v1119 = vadd.s32 %v1118, 127
        %v1120 = vshll.u32 %v1119, 23
        %v1121 = vor.u32 4788187, %v1120
        %v1122 = vand.u32 2147483647, %v1121
        %v1124 = vcvt.s32.f32 %v1117
        %v1125 = vmul.f32 %v1124, %v1122
        %v1126 = vxor.u32 %v1125, 2147483648
        %v1127 = vsel %vm1044, %v1126, %v1125
        %v1128 = vsub.s32 4, %v1104
        %v1129 = vsel %vm1044, %v1128, %v1104
        %v1130 = vsel %vm1043, %v203, %v1127
        %v1131 = vsel %vm1043, 0, %v1129
        %v1132 = vcosq.f32.pop %v1130
        %v1133 = vsinq.f32.pop %v1130
        %vm1134 = vweird.f32 %v203
        %v1135 = vand.u32 %v1131, 3
        %vm1136 = vcmp.lt.s32.totalorder %v1135, 2
        %vm1137 = vcmp.eq.s32.totalorder %v1135, 0
        %v1138 = vxor.u32 %v1133, 2147483648
        %v1139 = vsel %vm1137, %v1132, %v1138
        %vm1140 = vcmp.eq.s32.totalorder %v1135, 2
        %v1141 = vxor.u32 %v1132, 2147483648
        %v1142 = vsel %vm1140, %v1141, %v1133
        %v1143 = vsel %vm1136, %v1139, %v1142
        %v1144 = vsel %vm1134, nan, %v1143
        %v1145 = vand.u32 2147483647, %v209
        %vm1146 = vcmp.le.f32.partialorder %v1145, 0.7853982
        %vm1147 = vcmp.lt.s32.totalorder %v209, 0
        %v1148 = vand.u32 %v209, 2139095040
        %v1149 = vshrl.u32 %v1148, 23
        %v1150 = vsub.s32 %v1149, 127
        %v1151 = vand.u32 2147483647, %v209
        %v1152 = vand.u32 %v1151, 8388607
        %v1153 = vor.u32 %v1152, 8388608
        %v1154 = vsub.s32 0, %v1153
        %v1155 = vadd.s32 %v1150, 1
        %vm1156 = vcmp.gt.s32.totalorder %v1155, 0
        %v1157 = vsel %vm1156, %v1155, 0
        %v1158 = vshrl.u32 %v1157, 5
        %v1159 = vand.u32 %v1157, 31
        %v1160 = vsub.s32 32, %v1159
        %v1161 = vshrl.u32 683565275, %v1160
        %v1162 = vshll.u32 683565275, %v1159
        %v1163 = vshrl.u32 2475754826, %v1160
        %v1164 = vor.u32 %v1162, %v1163
        %v1165 = vshll.u32 2475754826, %v1159
        %v1166 = vshrl.u32 2131351028, %v1160
        %v1167 = vor.u32 %v1165, %v1166
        %v1168 = vshll.u32 2131351028, %v1159
        %v1169 = vshrl.u32 2102212464, %v1160
        %v1170 = vor.u32 %v1168, %v1169
        %v1171 = vshll.u32 2102212464, %v1159
        %v1172 = vshrl.u32 920167782, %v1160
        %v1173 = vor.u32 %v1171, %v1172
        %v1174 = vshll.u32 920167782, %v1159
        %v1175 = vshrl.u32 1326507024, %v1160
        %v1176 = vor.u32 %v1174, %v1175
        %vm1177 = vcmp.lt.s32.totalorder %v1158, 1
        %vm1178 = vcmp.lt.s32.totalorder %v1158, 2
        %vm1179 = vcmp.lt.s32.totalorder %v1158, 3
        %vm1180 = vcmp.lt.s32.totalorder %v1158, 4
        %v1181 = vsel %vm1177, %v1161, %v1164
        %v1182 = vsel %vm1180, %v1170, 2102212464
        %v1183 = vsel %vm1179, %v1167, %v1182
        %v1184 = vsel %vm1178, %v1181, %v1183
        %v1185 = vsel %vm1177, %v1164, %v1167
        %v1186 = vsel %vm1180, %v1173, 920167782
        %v1187 = vsel %vm1179, %v1170, %v1186
        %v1188 = vsel %vm1178, %v1185, %v1187
        %v1189 = vsel %vm1177, %v1167, %v1170
        %v1190 = vsel %vm1180, %v1176, 1326507024
        %v1191 = vsel %vm1179, %v1173, %v1190
        %v1192 = vsel %vm1178, %v1189, %v1191
        %v1193 = vshll.u32 %v1153, 8
        %v1194 = vmul.u32.u64.compose %v1193, %v1192
        %v1195 = vextract.low.u32 %v1194
        %v1196 = vextract.high.u32 %v1194
        %v1197 = vmul.u32.u64.compose %v1193, %v1188
        %v1198 = vextract.low.u32 %v1197
        %v1199 = vextract.high.u32 %v1197
        %v1200 = vmul.u32 %v1193, %v1184
        %v1201 = vadd.s32 %v1196, %v1198
        %vm1202 = vc.u32 %v1196, %v1198
        %v1203 = vadd.s32 %v1199, 1
        %v1204 = vsel %vm1202, %v1203, %v1199
        %v1205 = vadd.s32 %v1200, %v1204
        %v1206 = vadd.s32 %v1205, 536870912
        %v1207 = vshrl.u32 %v1206, 30
        %v1208 = vshll.u32 %v1207, 30
        %v1209 = vsub.s32 %v1205, %v1208
        %vm1210 = vcmp.lt.s32.totalorder %v1209, 0
        %v1211 = vsub.s32 0, %v1209
        %v1212 = vsel %vm1210, %v1211, %v1209
        %v1213 = vclz %v1212
        %v1214 = vsub.s32 %v1213, 2
        %vm1215 = vcmp.gt.s32.totalorder 0, %v1214
        %v1216 = vsel %vm1215, 0, %v1214
        %v1217 = vsub.s32 32, %v1216
        %v1218 = vshll.u32 %v1209, %v1216
        %v1219 = vshrl.u32 %v1201, %v1217
        %v1220 = vor.u32 %v1218, %v1219
        %v1221 = vsub.s32 4294967266, %v1216
        %v1222 = vadd.s32 %v1221, 127
        %v1223 = vshll.u32 %v1222, 23
        %v1224 = vor.u32 4788187, %v1223
        %v1225 = vand.u32 2147483647, %v1224
        %v1227 = vcvt.s32.f32 %v1220
        %v1228 = vmul.f32 %v1227, %v1225
        %v1229 = vxor.u32 %v1228, 2147483648
        %v1230 = vsel %vm1147, %v1229, %v1228
        %v1231 = vsub.s32 4, %v1207
        %v1232 = vsel %vm1147, %v1231, %v1207
        %v1233 = vsel %vm1146, %v209, %v1230
        %v1234 = vsel %vm1146, 0, %v1232
        %v1235 = vcosq.f32.pop %v1233
        %v1236 = vsinq.f32.pop %v1233
        %vm1237 = vweird.f32 %v209
        %v1238 = vand.u32 %v1234, 3
        %vm1239 = vcmp.lt.s32.totalorder %v1238, 2
        %vm1240 = vcmp.eq.s32.totalorder %v1238, 0
        %v1241 = vxor.u32 %v1236, 2147483648
        %v1242 = vsel %vm1240, %v1235, %v1241
        %vm1243 = vcmp.eq.s32.totalorder %v1238, 2
        %v1244 = vxor.u32 %v1235, 2147483648
        %v1245 = vsel %vm1243, %v1244, %v1236
        %v1246 = vsel %vm1239, %v1242, %v1245
        %v1247 = vsel %vm1237, nan, %v1246
        %v1248 = vand.u32 2147483647, %v210
        %vm1249 = vcmp.le.f32.partialorder %v1248, 0.7853982
        %vm1250 = vcmp.lt.s32.totalorder %v210, 0
        %v1251 = vand.u32 %v210, 2139095040
        %v1252 = vshrl.u32 %v1251, 23
        %v1253 = vsub.s32 %v1252, 127
        %v1254 = vand.u32 2147483647, %v210
        %v1255 = vand.u32 %v1254, 8388607
        %v1256 = vor.u32 %v1255, 8388608
        %v1257 = vsub.s32 0, %v1256
        %v1258 = vadd.s32 %v1253, 1
        %vm1259 = vcmp.gt.s32.totalorder %v1258, 0
        %v1260 = vsel %vm1259, %v1258, 0
        %v1261 = vshrl.u32 %v1260, 5
        %v1262 = vand.u32 %v1260, 31
        %v1263 = vsub.s32 32, %v1262
        %v1264 = vshrl.u32 683565275, %v1263
        %v1265 = vshll.u32 683565275, %v1262
        %v1266 = vshrl.u32 2475754826, %v1263
        %v1267 = vor.u32 %v1265, %v1266
        %v1268 = vshll.u32 2475754826, %v1262
        %v1269 = vshrl.u32 2131351028, %v1263
        %v1270 = vor.u32 %v1268, %v1269
        %v1271 = vshll.u32 2131351028, %v1262
        %v1272 = vshrl.u32 2102212464, %v1263
        %v1273 = vor.u32 %v1271, %v1272
        %v1274 = vshll.u32 2102212464, %v1262
        %v1275 = vshrl.u32 920167782, %v1263
        %v1276 = vor.u32 %v1274, %v1275
        %v1277 = vshll.u32 920167782, %v1262
        %v1278 = vshrl.u32 1326507024, %v1263
        %v1279 = vor.u32 %v1277, %v1278
        %vm1280 = vcmp.lt.s32.totalorder %v1261, 1
        %vm1281 = vcmp.lt.s32.totalorder %v1261, 2
        %vm1282 = vcmp.lt.s32.totalorder %v1261, 3
        %vm1283 = vcmp.lt.s32.totalorder %v1261, 4
        %v1284 = vsel %vm1280, %v1264, %v1267
        %v1285 = vsel %vm1283, %v1273, 2102212464
        %v1286 = vsel %vm1282, %v1270, %v1285
        %v1287 = vsel %vm1281, %v1284, %v1286
        %v1288 = vsel %vm1280, %v1267, %v1270
        %v1289 = vsel %vm1283, %v1276, 920167782
        %v1290 = vsel %vm1282, %v1273, %v1289
        %v1291 = vsel %vm1281, %v1288, %v1290
        %v1292 = vsel %vm1280, %v1270, %v1273
        %v1293 = vsel %vm1283, %v1279, 1326507024
        %v1294 = vsel %vm1282, %v1276, %v1293
        %v1295 = vsel %vm1281, %v1292, %v1294
        %v1296 = vshll.u32 %v1256, 8
        %v1297 = vmul.u32.u64.compose %v1296, %v1295
        %v1298 = vextract.low.u32 %v1297
        %v1299 = vextract.high.u32 %v1297
        %v1300 = vmul.u32.u64.compose %v1296, %v1291
        %v1301 = vextract.low.u32 %v1300
        %v1302 = vextract.high.u32 %v1300
        %v1303 = vmul.u32 %v1296, %v1287
        %v1304 = vadd.s32 %v1299, %v1301
        %vm1305 = vc.u32 %v1299, %v1301
        %v1306 = vadd.s32 %v1302, 1
        %v1307 = vsel %vm1305, %v1306, %v1302
        %v1308 = vadd.s32 %v1303, %v1307
        %v1309 = vadd.s32 %v1308, 536870912
        %v1310 = vshrl.u32 %v1309, 30
        %v1311 = vshll.u32 %v1310, 30
        %v1312 = vsub.s32 %v1308, %v1311
        %vm1313 = vcmp.lt.s32.totalorder %v1312, 0
        %v1314 = vsub.s32 0, %v1312
        %v1315 = vsel %vm1313, %v1314, %v1312
        %v1316 = vclz %v1315
        %v1317 = vsub.s32 %v1316, 2
        %vm1318 = vcmp.gt.s32.totalorder 0, %v1317
        %v1319 = vsel %vm1318, 0, %v1317
        %v1320 = vsub.s32 32, %v1319
        %v1321 = vshll.u32 %v1312, %v1319
        %v1322 = vshrl.u32 %v1304, %v1320
        %v1323 = vor.u32 %v1321, %v1322
        %v1324 = vsub.s32 4294967266, %v1319
        %v1325 = vadd.s32 %v1324, 127
        %v1326 = vshll.u32 %v1325, 23
        %v1327 = vor.u32 4788187, %v1326
        %v1328 = vand.u32 2147483647, %v1327
        %v1330 = vcvt.s32.f32 %v1323
        %v1331 = vmul.f32 %v1330, %v1328
        %v1332 = vxor.u32 %v1331, 2147483648
        %v1333 = vsel %vm1250, %v1332, %v1331
        %v1334 = vsub.s32 4, %v1310
        %v1335 = vsel %vm1250, %v1334, %v1310
        %v1336 = vsel %vm1249, %v210, %v1333
        %v1337 = vsel %vm1249, 0, %v1335
        %v1338 = vcosq.f32.pop %v1336
        %v1339 = vsinq.f32.pop %v1336
        %vm1340 = vweird.f32 %v210
        %v1341 = vand.u32 %v1337, 3
        %vm1342 = vcmp.lt.s32.totalorder %v1341, 2
        %vm1343 = vcmp.eq.s32.totalorder %v1341, 0
        %v1344 = vxor.u32 %v1339, 2147483648
        %v1345 = vsel %vm1343, %v1338, %v1344
        %vm1346 = vcmp.eq.s32.totalorder %v1341, 2
        %v1347 = vxor.u32 %v1338, 2147483648
        %v1348 = vsel %vm1346, %v1347, %v1339
        %v1349 = vsel %vm1342, %v1345, %v1348
        %v1350 = vsel %vm1340, nan, %v1349
        %v1351 = vand.u32 2147483647, %v211
        %vm1352 = vcmp.le.f32.partialorder %v1351, 0.7853982
        %vm1353 = vcmp.lt.s32.totalorder %v211, 0
        %v1354 = vand.u32 %v211, 2139095040
        %v1355 = vshrl.u32 %v1354, 23
        %v1356 = vsub.s32 %v1355, 127
        %v1357 = vand.u32 2147483647, %v211
        %v1358 = vand.u32 %v1357, 8388607
        %v1359 = vor.u32 %v1358, 8388608
        %v1360 = vsub.s32 0, %v1359
        %v1361 = vadd.s32 %v1356, 1
        %vm1362 = vcmp.gt.s32.totalorder %v1361, 0
        %v1363 = vsel %vm1362, %v1361, 0
        %v1364 = vshrl.u32 %v1363, 5
        %v1365 = vand.u32 %v1363, 31
        %v1366 = vsub.s32 32, %v1365
        %v1367 = vshrl.u32 683565275, %v1366
        %v1368 = vshll.u32 683565275, %v1365
        %v1369 = vshrl.u32 2475754826, %v1366
        %v1370 = vor.u32 %v1368, %v1369
        %v1371 = vshll.u32 2475754826, %v1365
        %v1372 = vshrl.u32 2131351028, %v1366
        %v1373 = vor.u32 %v1371, %v1372
        %v1374 = vshll.u32 2131351028, %v1365
        %v1375 = vshrl.u32 2102212464, %v1366
        %v1376 = vor.u32 %v1374, %v1375
        %v1377 = vshll.u32 2102212464, %v1365
        %v1378 = vshrl.u32 920167782, %v1366
        %v1379 = vor.u32 %v1377, %v1378
        %v1380 = vshll.u32 920167782, %v1365
        %v1381 = vshrl.u32 1326507024, %v1366
        %v1382 = vor.u32 %v1380, %v1381
        %vm1383 = vcmp.lt.s32.totalorder %v1364, 1
        %vm1384 = vcmp.lt.s32.totalorder %v1364, 2
        %vm1385 = vcmp.lt.s32.totalorder %v1364, 3
        %vm1386 = vcmp.lt.s32.totalorder %v1364, 4
        %v1387 = vsel %vm1383, %v1367, %v1370
        %v1388 = vsel %vm1386, %v1376, 2102212464
        %v1389 = vsel %vm1385, %v1373, %v1388
        %v1390 = vsel %vm1384, %v1387, %v1389
        %v1391 = vsel %vm1383, %v1370, %v1373
        %v1392 = vsel %vm1386, %v1379, 920167782
        %v1393 = vsel %vm1385, %v1376, %v1392
        %v1394 = vsel %vm1384, %v1391, %v1393
        %v1395 = vsel %vm1383, %v1373, %v1376
        %v1396 = vsel %vm1386, %v1382, 1326507024
        %v1397 = vsel %vm1385, %v1379, %v1396
        %v1398 = vsel %vm1384, %v1395, %v1397
        %v1399 = vshll.u32 %v1359, 8
        %v1400 = vmul.u32.u64.compose %v1399, %v1398
        %v1401 = vextract.low.u32 %v1400
        %v1402 = vextract.high.u32 %v1400
        %v1403 = vmul.u32.u64.compose %v1399, %v1394
        %v1404 = vextract.low.u32 %v1403
        %v1405 = vextract.high.u32 %v1403
        %v1406 = vmul.u32 %v1399, %v1390
        %v1407 = vadd.s32 %v1402, %v1404
        %vm1408 = vc.u32 %v1402, %v1404
        %v1409 = vadd.s32 %v1405, 1
        %v1410 = vsel %vm1408, %v1409, %v1405
        %v1411 = vadd.s32 %v1406, %v1410
        %v1412 = vadd.s32 %v1411, 536870912
        %v1413 = vshrl.u32 %v1412, 30
        %v1414 = vshll.u32 %v1413, 30
        %v1415 = vsub.s32 %v1411, %v1414
        %vm1416 = vcmp.lt.s32.totalorder %v1415, 0
        %v1417 = vsub.s32 0, %v1415
        %v1418 = vsel %vm1416, %v1417, %v1415
        %v1419 = vclz %v1418
        %v1420 = vsub.s32 %v1419, 2
        %vm1421 = vcmp.gt.s32.totalorder 0, %v1420
        %v1422 = vsel %vm1421, 0, %v1420
        %v1423 = vsub.s32 32, %v1422
        %v1424 = vshll.u32 %v1415, %v1422
        %v1425 = vshrl.u32 %v1407, %v1423
        %v1426 = vor.u32 %v1424, %v1425
        %v1427 = vsub.s32 4294967266, %v1422
        %v1428 = vadd.s32 %v1427, 127
        %v1429 = vshll.u32 %v1428, 23
        %v1430 = vor.u32 4788187, %v1429
        %v1431 = vand.u32 2147483647, %v1430
        %v1433 = vcvt.s32.f32 %v1426
        %v1434 = vmul.f32 %v1433, %v1431
        %v1435 = vxor.u32 %v1434, 2147483648
        %v1436 = vsel %vm1353, %v1435, %v1434
        %v1437 = vsub.s32 4, %v1413
        %v1438 = vsel %vm1353, %v1437, %v1413
        %v1439 = vsel %vm1352, %v211, %v1436
        %v1440 = vsel %vm1352, 0, %v1438
        %v1441 = vcosq.f32.pop %v1439
        %v1442 = vsinq.f32.pop %v1439
        %vm1443 = vweird.f32 %v211
        %v1444 = vand.u32 %v1440, 3
        %vm1445 = vcmp.lt.s32.totalorder %v1444, 2
        %vm1446 = vcmp.eq.s32.totalorder %v1444, 0
        %v1447 = vxor.u32 %v1442, 2147483648
        %v1448 = vsel %vm1446, %v1441, %v1447
        %vm1449 = vcmp.eq.s32.totalorder %v1444, 2
        %v1450 = vxor.u32 %v1441, 2147483648
        %v1451 = vsel %vm1449, %v1450, %v1442
        %v1452 = vsel %vm1445, %v1448, %v1451
        %v1453 = vsel %vm1443, nan, %v1452
        %vm1460 = vcmask 1046528
        %v1461 = vrot.slane %v938, 1
        %v1462 = vrot.slane %v1041, 1
        %v1463 = vrot.slane %v1144, 1
        %v1464 = vrot.slane %v1247, 1
        %v1465 = vsel %vm1460, %v1461, %v1464
        %v1466 = vrot.slane %v1350, 1
        %v1467 = vsel %vm1460, %v1462, %v1466
        %v1468 = vrot.slane %v1453, 1
        %v1469 = vsel %vm1460, %v1463, %v1468
        %v1479 = vrot.slane %v149, 2
        %v1480 = vrot.slane %v161, 2
        %v1481 = vrot.slane %v150, 2
        %v1485 = vsel %vm1460, %v627, %v1461
        %v1486 = vsel %vm1460, %v731, %v1462
        %v1487 = vsel %vm1460, %v835, %v1463
        %v1488 = vsel %vm200, %v1464, %v1479
        %v1489 = vsel %vm200, %v1466, %v1480
        %v1490 = vsel %vm200, %v1468, %v1481
        %1491 = vst [vmem:[%s138] sm:$0xff] %v315
        %1492 = vst [vmem:[%s138 + $0x8] sm:$0xff] %v419
        %1493 = vst [vmem:[%s138 + $0x10] sm:$0xff] %v523
        %1494 = vst [vmem:[%s138 + $0x18] sm:$0xff] %v1485
        %1495 = vst [vmem:[%s138 + $0x20] sm:$0xff] %v1486
        %1496 = vst [vmem:[%s138 + $0x28] sm:$0xff] %v1487
        %1497 = vst [vmem:[%s138 + $0x30] sm:$0xff] %v1465
        %1498 = vst [vmem:[%s138 + $0x38] sm:$0xff] %v1467
        %1499 = vst [vmem:[%s138 + $0x40] sm:$0xff] %v1469
        %1500 = vst [vmem:[%s138 + $0x48] sm:$0xff] %v1488
        %1501 = vst [vmem:[%s138 + $0x50] sm:$0xff] %v1489
        %1502 = vst [vmem:[%s138 + $0x58] sm:$0xff] %v1490
        %1503 = vst [vmem:[%s138 + $0x60] sm:$0x1] %v1479
        %1504 = vst [vmem:[%s138 + $0x68] sm:$0x1] %v1480
        %1505 = vst [vmem:[%s138 + $0x70] sm:$0x1] %v1481
        %s1506 = sand.u32 %s52, 1
        %s1507 = scalar_lea.sflag [#allocation4], %s1506
        %s1508 = sand.u32 %s52, 1
        %s1509 = smul.addr %s1508, 120
        %s1510 = scalar_lea.vmem [#allocation5], %s1509
        // Predicated region
        $region29: #{tpu_custom_call.1} parent=23 // pred_check
          %p1511 = pneg %p62
        $region30: #{tpu_custom_call.1} parent=23 // pred_check_branch
          %1513 = sbr.rel (%p1511) target = $region32
        $region31: #{tpu_custom_call.1} parent=23 // pred_region
          %s1514 = smul.u32 3, %s18
          %s1515 = ssub.s32 5, %s1514
          %p1516 = scmp.lt.s32.totalorder %s1515, 3
          %s1517 = scalar_select %p1516, %s1515, 3
          %s1518 = smul.u32 640, %s1517
          %s1520 = ssub.s32 1920, %s1518
          %1521 = vsyncadd %s1507, %s1520
          %p1522 = scmp.ne.s32.totalorder 0, %s1518
          %s1523 = smul.addr %s1514, 128
          %s1524 = scalar_lea.hbm %s1, %s1523
          %s1525 = smul.u32 %s1517, 8
          %s1526 = smul.u32 %s1525, 5
          %s1527 = sshll.u32 %s1510, 4
          %s1528 = int_to_ptr.vmem [resolvable:$true] %s1527
          %s1529 = sshll.u32 %s1526, 4
          %1533 = dma.vmem_to_hbm [thread:$0]  (%p1522), %s1528, %s1529, %s1524, %s1507, 384, 640, %s1525
        $region32: #{tpu_custom_call.1} parent=23 // pred_fallthru
          _
      $region24: #{tpu_custom_call.1} parent=5 // pred_fallthru
        _
      %p1534 = scmp.le.s32.totalorder 2, %s13
      // Predicated region
      $region33: #{tpu_custom_call.1} parent=5 // pred_check
        %p1535 = pneg %p1534
      $region34: #{tpu_custom_call.1} parent=5 // pred_check_branch
        %1537 = sbr.rel (%p1535) target = $region36
      $region35: #{tpu_custom_call.1} parent=5 // pred_region
        %s1538 = ssub.s32 %s13, 2
        // Predicated region
        $region37: #{tpu_custom_call.1} parent=35 // pred_check
          %p1539 = pneg %p68
        $region38: #{tpu_custom_call.1} parent=35 // pred_check_branch
          %1541 = sbr.rel (%p1539) target = $region40
        $region39: #{tpu_custom_call.1} parent=35 // pred_region
          %s1542 = sand.u32 %s53, 1
          %s1543 = scalar_lea.sflag [#allocation4], %s1542
          %s1544 = sand.u32 %s53, 1
          %s1545 = smul.addr %s1544, 120
          %s1546 = scalar_lea.vmem [#allocation5], %s1545
          %1547 = dma.done %s1543, 1920
        $region40: #{tpu_custom_call.1} parent=35 // pred_fallthru
          _
      $region36: #{tpu_custom_call.1} parent=5 // pred_fallthru
        _
    $region6: #{tpu_custom_call.1} parent=1 // loop_footer
      %s17 = sadd.s32 1, %s13
    $region7: #{tpu_custom_call.1} parent=1 // loop_footer_branch
      %12 = sbr.rel target = $region3
    $region8: #{tpu_custom_call.1} parent=1 // loop_exit
      _
    %1548 = vsyncpa [#allocation3], 1
    %s1549 = scalar_lea.sflag [#allocation3], 1
    %1550 = vsyncpa %s1549, 1
    %1551 = vsyncpa [#allocation4], 1
    %s1552 = scalar_lea.sflag [#allocation4], 1
    %1553 = vsyncpa %s1552, 1

</llo_original>
